<compile_context>
chip_gen: v5e
topology: v5e:2x2
jax: 0.10.0
libtpu: 0.0.40
codegen_flags: <defaults>
</compile_context>

<pallas_src>
import functools

import jax
import jax.numpy as jnp
from jax.experimental import pallas as pl
from jax.experimental.pallas import tpu as pltpu


def _round_up(x: int, m: int) -> int:
    return (x + m - 1) // m * m


def _fused_prior_kernel(h_ref, w_ref, b_ref, m_ref, o_ref):
    # One fused matmul for both heads: (tb, H) @ (H, tz) -> (tb, tz), f32 acc.
    pre = jnp.dot(h_ref[...], w_ref[...], preferred_element_type=jnp.float32)
    pre = pre + b_ref[...]                       # f32 epilogue, (1, tz) broadcast
    # PyTorch softplus (beta=1, threshold=20) with overflow guard.
    sp = jnp.where(pre > 20.0, pre, jnp.log1p(jnp.exp(jnp.minimum(pre, 20.0))))
    # Column mask: 1.0 on the "var" half (softplus), 0.0 on the "loc" half.
    o_ref[...] = jnp.where(m_ref[...] > 0.0, sp, pre).astype(o_ref.dtype)


def prepare_params(w1, b1, w2, b2, *, compute_dtype=jnp.bfloat16):
    """One-time preprocessing (hoisted out of the hot path).

    w1, w2: (Z, H) PyTorch layout; b1, b2: (Z,).
    Returns:
      w_fused : (H, Zf_pad) compute_dtype, columns = [W1^T | W2^T | zero pad]
      b_fused : (1, Zf_pad) float32
      sp_mask : (1, Zf_pad) float32, 1.0 where softplus applies
      z_dim   : int
    """
    z_dim, h_dim = w1.shape
    zf = 2 * z_dim
    zf_pad = _round_up(zf, 128)                  # lane-dense output width

    w = jnp.concatenate([w1.T, w2.T], axis=1)    # (H, 2Z)
    w = jnp.pad(w, ((0, 0), (0, zf_pad - zf))).astype(compute_dtype)

    b = jnp.concatenate([b1, b2]).astype(jnp.float32)
    b = jnp.pad(b, (0, zf_pad - zf)).reshape(1, zf_pad)

    mask = jnp.concatenate([
        jnp.zeros((z_dim,), jnp.float32),        # loc columns: identity
        jnp.ones((z_dim,), jnp.float32),         # var columns: softplus
        jnp.zeros((zf_pad - zf,), jnp.float32),  # padding
    ]).reshape(1, zf_pad)
    return w, b, mask, z_dim


@functools.partial(jax.jit, static_argnames=("z_dim", "tb_max", "tz_max"))
def stochastic_prior(h, w_fused, b_fused, sp_mask, *, z_dim,
                     tb_max=256, tz_max=512):
    """loc, var = StochasticPrior(h) using pre-fused params from prepare_params."""
    B, H = h.shape
    zf_pad = w_fused.shape[1]

    # Batch tiling: sublane-aligned tile, pad B up to a multiple of the tile.
    tb = min(_round_up(B, 8), tb_max)
    Bp = _round_up(B, tb)

    # Fused-Z tiling: tz is a multiple of 128 that divides zf_pad.
    if zf_pad <= tz_max:
        tz = zf_pad
    elif zf_pad % tz_max == 0:
        tz = tz_max
    elif zf_pad % 256 == 0:
        tz = 256
    else:
        tz = 128

    hp = h.astype(w_fused.dtype)                 # MXU input dtype (bf16 default)
    if Bp != B:
        hp = jnp.pad(hp, ((0, Bp - B), (0, 0)))

    grid = (Bp // tb, zf_pad // tz)
    out = pl.pallas_call(
        _fused_prior_kernel,
        out_shape=jax.ShapeDtypeStruct((Bp, zf_pad), jnp.float32),
        grid=grid,
        in_specs=[
            pl.BlockSpec((tb, H), lambda i, j: (i, 0)),   # activations
            pl.BlockSpec((H, tz), lambda i, j: (0, j)),   # fused weights
            pl.BlockSpec((1, tz), lambda i, j: (0, j)),   # fused bias (f32)
            pl.BlockSpec((1, tz), lambda i, j: (0, j)),   # softplus mask
        ],
        out_specs=pl.BlockSpec((tb, tz), lambda i, j: (i, j)),
        compiler_params=pltpu.CompilerParams(
            dimension_semantics=("parallel", "parallel")),
    )(hp, w_fused, b_fused, sp_mask)

    loc = out[:B, :z_dim]
    var = out[:B, z_dim:2 * z_dim]
    return loc, var


def _init_params(key, h_dim, z_dim):
    # Deterministic synthetic init mimicking nn.Linear default:
    # U(-1/sqrt(h_dim), 1/sqrt(h_dim)) for both weight and bias.
    bound = 1.0 / jnp.sqrt(jnp.float32(h_dim))
    k1, k2, k3, k4 = jax.random.split(key, 4)
    w1 = jax.random.uniform(k1, (z_dim, h_dim), jnp.float32, -bound, bound)
    b1 = jax.random.uniform(k2, (z_dim,), jnp.float32, -bound, bound)
    w2 = jax.random.uniform(k3, (z_dim, h_dim), jnp.float32, -bound, bound)
    b2 = jax.random.uniform(k4, (z_dim,), jnp.float32, -bound, bound)
    return w1, b1, w2, b2


if __name__ == "__main__":
    B, H_DIM, Z_DIM = 8, 32, 16

    key = jax.random.PRNGKey(0)
    k_h, k_p = jax.random.split(key)
    h = jax.random.normal(k_h, (B, H_DIM), jnp.float32)
    w1, b1, w2, b2 = _init_params(k_p, H_DIM, Z_DIM)

    # Plain-JAX reference.
    loc_ref = h @ w1.T + b1
    var_ref = jax.nn.softplus(h @ w2.T + b2)

    # 1) Default bf16-MXU / f32-accumulate path (production config).
    wf_bf16, bf, mask, zd = prepare_params(w1, b1, w2, b2,
                                           compute_dtype=jnp.bfloat16)
    loc, var = stochastic_prior(h, wf_bf16, bf, mask, z_dim=zd)
    jax.block_until_ready((loc, var))
    assert loc.shape == (B, Z_DIM) and var.shape == (B, Z_DIM)
    assert jnp.allclose(loc, loc_ref, atol=5e-2, rtol=5e-2)
    assert jnp.allclose(var, var_ref, atol=5e-2, rtol=5e-2)
    assert bool(jnp.all(var > 0))

    # 2) f32 path for exact validation of the fused-kernel math.
    wf_f32, bf32, mask32, _ = prepare_params(w1, b1, w2, b2,
                                             compute_dtype=jnp.float32)
    loc32, var32 = stochastic_prior(h, wf_f32, bf32, mask32, z_dim=zd)
    jax.block_until_ready((loc32, var32))
    assert jnp.allclose(loc32, loc_ref, atol=1e-5, rtol=1e-5)
    assert jnp.allclose(var32, var_ref, atol=1e-5, rtol=1e-5)

    print("KERNEL_OK")
</pallas_src>

<mosaic_0001>
module attributes {stable_mosaic.version = 11 : i64} {
  func.func @_fused_prior_kernel(%arg0: i32, %arg1: i32, %arg2: memref<8x32xbf16, #tpu.memory_space<vmem>>, %arg3: memref<32x128xbf16, #tpu.memory_space<vmem>>, %arg4: memref<1x128xf32, #tpu.memory_space<vmem>>, %arg5: memref<1x128xf32, #tpu.memory_space<vmem>>, %arg6: memref<8x128xf32, #tpu.memory_space<vmem>>) attributes {dimension_semantics = [#tpu.dimension_semantics<parallel>, #tpu.dimension_semantics<parallel>], iteration_bounds = array<i64: 1, 1>, scalar_prefetch = 0 : i64, scratch_operands = 0 : i64, tpu.core_type = #tpu.core_type<tc>, window_params = [{transform_indices = @transform_0, window_bounds = array<i64: 8, 32>}, {transform_indices = @transform_1, window_bounds = array<i64: 32, 128>}, {transform_indices = @transform_2, window_bounds = array<i64: 1, 128>}, {transform_indices = @transform_3, window_bounds = array<i64: 1, 128>}, {transform_indices = @transform_4, window_bounds = array<i64: 8, 128>}]} {
    %c0 = arith.constant 0 : index
    %c0_0 = arith.constant 0 : index
    %0 = vector.load %arg2[%c0, %c0_0] : memref<8x32xbf16, #tpu.memory_space<vmem>>, vector<8x32xbf16>
    %c0_1 = arith.constant 0 : index
    %c0_2 = arith.constant 0 : index
    %1 = vector.load %arg3[%c0_1, %c0_2] : memref<32x128xbf16, #tpu.memory_space<vmem>>, vector<32x128xbf16>
    %cst = arith.constant dense<0.000000e+00> : vector<8x128xf32>
    %2 = tpu.matmul %0, %1, %cst {dimension_numbers = #tpu.dot_dimension_numbers<[1], [0], [0], [1], [0, 0, 1, 1], [], []>} : vector<8x32xbf16>, vector<32x128xbf16>, vector<8x128xf32> -> vector<8x128xf32>
    %c0_3 = arith.constant 0 : index
    %c0_4 = arith.constant 0 : index
    %3 = vector.load %arg4[%c0_3, %c0_4] : memref<1x128xf32, #tpu.memory_space<vmem>>, vector<1x128xf32>
    %4 = vector.broadcast %3 : vector<1x128xf32> to vector<8x128xf32>
    %5 = arith.addf %2, %4 : vector<8x128xf32>
    %cst_5 = arith.constant 2.000000e+01 : f32
    %6 = vector.broadcast %cst_5 : f32 to vector<8x128xf32>
    %7 = arith.cmpf ogt, %5, %6 : vector<8x128xf32>
    %cst_6 = arith.constant 2.000000e+01 : f32
    %8 = vector.broadcast %cst_6 : f32 to vector<8x128xf32>
    %9 = arith.minimumf %5, %8 : vector<8x128xf32>
    %10 = math.exp %9 : vector<8x128xf32>
    %11 = math.log1p %10 : vector<8x128xf32>
    %12 = arith.select %7, %5, %11 : vector<8x128xi1>, vector<8x128xf32>
    %c0_7 = arith.constant 0 : index
    %c0_8 = arith.constant 0 : index
    %13 = vector.load %arg5[%c0_7, %c0_8] : memref<1x128xf32, #tpu.memory_space<vmem>>, vector<1x128xf32>
    %cst_9 = arith.constant 0.000000e+00 : f32
    %14 = vector.broadcast %cst_9 : f32 to vector<1x128xf32>
    %15 = arith.cmpf ogt, %13, %14 : vector<1x128xf32>
    %16 = vector.shape_cast %15 : vector<1x128xi1> to vector<1x128xi1>
    %17 = vector.broadcast %16 : vector<1x128xi1> to vector<8x128xi1>
    %18 = arith.select %17, %12, %5 : vector<8x128xi1>, vector<8x128xf32>
    %c0_10 = arith.constant 0 : index
    %c0_11 = arith.constant 0 : index
    %19 = vector.load %arg6[%c0_10, %c0_11] : memref<8x128xf32, #tpu.memory_space<vmem>>, vector<8x128xf32>
    tpu.vector_store %arg6[%c0_10, %c0_11], %18 {strides = array<i32>} : memref<8x128xf32, #tpu.memory_space<vmem>>, vector<8x128xf32>,
    return
  }
  func.func @transform_0(%arg0: i32, %arg1: i32) -> (i32, i32) {
    %c0_i32 = arith.constant 0 : i32
    %c0_i32_0 = arith.constant 0 : i32
    return %arg0, %c0_i32 : i32, i32
  }
  func.func @transform_1(%arg0: i32, %arg1: i32) -> (i32, i32) {
    %c0_i32 = arith.constant 0 : i32
    %c0_i32_0 = arith.constant 0 : i32
    return %c0_i32, %arg1 : i32, i32
  }
  func.func @transform_2(%arg0: i32, %arg1: i32) -> (i32, i32) {
    %c0_i32 = arith.constant 0 : i32
    %c0_i32_0 = arith.constant 0 : i32
    return %c0_i32, %arg1 : i32, i32
  }
  func.func @transform_3(%arg0: i32, %arg1: i32) -> (i32, i32) {
    %c0_i32 = arith.constant 0 : i32
    %c0_i32_0 = arith.constant 0 : i32
    return %c0_i32, %arg1 : i32, i32
  }
  func.func @transform_4(%arg0: i32, %arg1: i32) -> (i32, i32) {
    %c0_i32 = arith.constant 0 : i32
    return %arg0, %arg1 : i32, i32
  }
}

</mosaic_0001>

<llo_original>
// kernel: stochastic_prior.1
$region0: #{stochastic_prior.1}
  #allocation0 [shape = 'u32[]', space=smem, size = 0x4, offset = 0x4, fixed_abs, tag = 'smem constant byte address 0x4 - core index']
  #allocation1 [shape = 'u32[72,128]{1,0:T(1,128)}', space=vmem, size = 0x9000, scoped, tag = 'internal scratch']
  %s0 = inlined_call_operand.vmem [shape: bf16[8,32], index: 0, kind: input, shape index: {}]
  %s1 = inlined_call_operand.hbm [shape: bf16[32,128], index: 1, kind: input, shape index: {}]
  %s2 = inlined_call_operand.vmem [shape: f32[1,128], index: 2, kind: input, shape index: {}]
  %s3 = inlined_call_operand.vmem [shape: f32[1,128], index: 3, kind: input, shape index: {}]
  %s4 = inlined_call_operand.vmem [shape: f32[8,128], index: 4, kind: output, shape index: {}]
  %s5 = sld [smem:[#allocation0]]
  $region30: #{stochastic_prior.1} parent=0
    _
  %s7 = ssub.s32 1, %s5
  %s8 = scalar_select 0, %s7, %s5
  $region1: #{stochastic_prior.1} parent=0
    #allocation2 [shape = 'u8[8192]{0}', space=vmem, size = 0x2000, scoped, tag = 'input window, operand 1, single buffered']
    #allocation3 [shape = 's32[1]{0}', space=sflag, size = 0x4, scoped, tag = 'scoped memory for stochastic_prior.1']
    %9 = vsyncpa [#allocation3], 0
    // Predicated region
    $region2: #{stochastic_prior.1} parent=1 // pred_check
      _
    $region3: #{stochastic_prior.1} parent=1 // pred_check_branch
      %11 = sbr.rel (0) target = $region5
    $region4: #{stochastic_prior.1} parent=1 // pred_region
      _
    $region5: #{stochastic_prior.1} parent=1 // pred_fallthru
      _
    // Predicated region
    $region6: #{stochastic_prior.1} parent=1 // pred_check
      _
    $region7: #{stochastic_prior.1} parent=1 // pred_check_branch
      %13 = sbr.rel (0) target = $region9
    $region8: #{stochastic_prior.1} parent=1 // pred_region
      %15 = vsyncadd [#allocation3], 0
      %s16 = sshll.u32 %s1, 4
      %s17 = int_to_ptr.hbm [resolvable:$true] %s16
      %s18 = sshll.u32 [#allocation2], 4
      %s19 = int_to_ptr.vmem [resolvable:$true] %s18
      %24 = dma.hbm_to_vmem [thread:$0]  %s17, 256, %s19, [#allocation3], 64, 64, 4
    $region9: #{stochastic_prior.1} parent=1 // pred_fallthru
      _
    // Predicated region
    $region10: #{stochastic_prior.1} parent=1 // pred_check
      _
    $region11: #{stochastic_prior.1} parent=1 // pred_check_branch
      %26 = sbr.rel (0) target = $region13
    $region12: #{stochastic_prior.1} parent=1 // pred_region
      _
    $region13: #{stochastic_prior.1} parent=1 // pred_fallthru
      _
    // Predicated region
    $region14: #{stochastic_prior.1} parent=1 // pred_check
      _
    $region15: #{stochastic_prior.1} parent=1 // pred_check_branch
      %28 = sbr.rel (0) target = $region17
    $region16: #{stochastic_prior.1} parent=1 // pred_region
      _
    $region17: #{stochastic_prior.1} parent=1 // pred_fallthru
      _
    // Predicated region
    $region18: #{stochastic_prior.1} parent=1 // pred_check
      _
    $region19: #{stochastic_prior.1} parent=1 // pred_check_branch
      %30 = sbr.rel (0) target = $region21
    $region20: #{stochastic_prior.1} parent=1 // pred_region
      %32 = dma.done [#allocation3], 256
    $region21: #{stochastic_prior.1} parent=1 // pred_fallthru
      _
    %v34 = vld [vmem:[%s0] sm:$0xf]
    %v35 = vld [vmem:[#allocation2] sm:$0xf]
    %v36 = vld [vmem:[#allocation2 + $0x4] sm:$0xf]
    %v37 = vld [vmem:[#allocation2 + $0x8] sm:$0xf]
    %v38 = vld [vmem:[#allocation2 + $0xc] sm:$0xf]
    %v39 = vld [vmem:[%s2] sm:$0x1]
    %v41 = vperm.slane %v39, 0
    %v47 = vunpack.c.l.b16 %v35
    %v48 = vunpack.c.l.b16 %v36
    %v49 = vunpack.c.l.b16 %v37
    %v50 = vunpack.c.l.b16 %v38
    %v51 = vpack.c.b16 %v48, %v47
    %v52 = vpack.c.b16 %v50, %v49
    %vm55 = vcmask 261120
    %v57 = vsel %vm55, %v34, 0
    %59 = vmatpush.bf16.msra.mxu0 0
    %60 = vmatpush.bf16.msra.mxu0 0
    %61 = vmatpush.bf16.msra.mxu0 0
    %62 = vmatpush.bf16.msra.mxu0 0
    %63 = vmatpush.bf16.msra.mxu0 0
    %64 = vmatpush.bf16.msra.mxu0 0
    %65 = vmatpush.bf16.msra.mxu0 %v52
    %66 = vmatpush.bf16.msra.mxu0 %v51
    %67 = vmatmul.bf16.gmra.mxu0 %v57
    %v68 = vpop.f32.mrf.mxu0
    %v69 = vadd.f32 %v41, %v68
    %v70 = vpop.f32.mrf.mxu0
    %71 = vdwg.mxu0
    %vm72 = vcmp.gt.f32.partialorder %v69, 20.0
    %v73 = vmin.f32 %v69, 20.0
    %v74 = vmul.f32 %v73, 1.442695
    %v75 = vpow.pop %v74
    %v76 = vadd.f32 %v75, 1.0
    %v77 = vlog2.pop %v76
    %v78 = vmul.f32 %v77, 0.6931472
    %v79 = vmul.f32 -0.5, %v75
    %v80 = vadd.f32 %v79, 1.0
    %v81 = vmul.f32 %v80, %v75
    %v82 = vand.u32 2147483647, %v75
    %vm83 = vcmp.lt.f32.partialorder %v82, 0.0004427343
    %v84 = vsel %vm83, %v81, %v78
    %v85 = vsel %vm72, %v69, %v84
    %v86 = vld [vmem:[%s3] sm:$0x1]
    %vm87 = vcmp.gt.f32.partialorder %v86, 0.0
    %v88 = vsel %vm87, 1, 0
    %v89 = vperm.slane %v88, 0
    %vm90 = vcmp.eq.s32.totalorder %v89, 1
    %v91 = vsel %vm90, %v85, %v69
    %92 = vst [vmem:[%s4] sm:$0xff] %v91
    // Predicated region
    $region22: #{stochastic_prior.1} parent=1 // pred_check
      _
    $region23: #{stochastic_prior.1} parent=1 // pred_check_branch
      %94 = sbr.rel (0) target = $region25
    $region24: #{stochastic_prior.1} parent=1 // pred_region
      _
    $region25: #{stochastic_prior.1} parent=1 // pred_fallthru
      _
    // Predicated region
    $region26: #{stochastic_prior.1} parent=1 // pred_check
      _
    $region27: #{stochastic_prior.1} parent=1 // pred_check_branch
      %96 = sbr.rel (0) target = $region29
    $region28: #{stochastic_prior.1} parent=1 // pred_region
      _
    $region29: #{stochastic_prior.1} parent=1 // pred_fallthru
      _
    %97 = vsyncpa [#allocation3], 1

</llo_original>
